<compile_context>
chip_gen: v6e
topology: v6e:2x2x1
jax: 0.10.0
libtpu: 0.0.40
codegen_flags: <defaults>
</compile_context>

<pallas_src>
import jax
import jax.numpy as jnp
from jax.experimental import pallas as pl
from jax.experimental.pallas import tpu as pltpu


def _make_triplet_kernel(batch):
    """Builds the fused triplet-MLP kernel for a given per-branch batch size."""

    def kernel(x1_ref, x2_ref, x3_ref, w1_ref, b1_ref, w2_ref, b2_ref,
               o1_ref, o2_ref, o3_ref):
        # x*_ref: (B, D) f32    w1_ref: (D, H) bf16   b1_ref: (1, H) f32
        # w2_ref: (H, E) bf16   b2_ref: (1, E) f32    o*_ref: (B, E) f32
        #
        # Concatenate the three branches along the sublane axis. Each branch
        # is a whole number of 8-row f32 sublane tiles, so this is a cheap
        # VMEM retile (no HBM round trip, unlike the old jnp.stack).
        x = jnp.concatenate([x1_ref[...], x2_ref[...], x3_ref[...]], axis=0)

        # Layer 1: bf16 MXU matmul, f32 accumulation, f32 bias + ReLU on VPU.
        h = jnp.dot(x.astype(jnp.bfloat16), w1_ref[...],
                    preferred_element_type=jnp.float32)
        h = jnp.maximum(h + b1_ref[...], 0.0)

        # Layer 2: bf16 MXU matmul, f32 accumulation, f32 bias.
        y = jnp.dot(h.astype(jnp.bfloat16), w2_ref[...],
                    preferred_element_type=jnp.float32)
        y = y + b2_ref[...]

        # Static, 8-row-aligned slices back into the three branch outputs.
        o1_ref[...] = y[0 * batch:1 * batch, :]
        o2_ref[...] = y[1 * batch:2 * batch, :]
        o3_ref[...] = y[2 * batch:3 * batch, :]

    return kernel


def triplet_net_forward(x1, x2, x3, params):
    """Apply the shared embedding net to x1, x2, x3 (TripletNet.forward).

    x1, x2, x3: (B, D) float32
    params: dict with w1 (D,H) bf16, b1 (H,) f32, w2 (H,E) bf16, b2 (E,) f32
    Returns (out1, out2, out3), each (B, E) float32.
    """
    w1, b1, w2, b2 = params["w1"], params["b1"], params["w2"], params["b2"]
    B, D = x1.shape
    H = w1.shape[1]
    E = w2.shape[1]

    # Whole-array blocks resident in VMEM; single kernel invocation (no grid),
    # so weights are DMA'd exactly once and there is no per-step overhead.
    vmem = lambda: pl.BlockSpec(memory_space=pltpu.MemorySpace.VMEM)

    out1, out2, out3 = pl.pallas_call(
        _make_triplet_kernel(B),
        out_shape=(
            jax.ShapeDtypeStruct((B, E), jnp.float32),
            jax.ShapeDtypeStruct((B, E), jnp.float32),
            jax.ShapeDtypeStruct((B, E), jnp.float32),
        ),
        in_specs=[vmem() for _ in range(7)],
        out_specs=(vmem(), vmem(), vmem()),
    )(x1, x2, x3, w1, b1.reshape(1, H), w2, b2.reshape(1, E))

    return out1, out2, out3


def get_embedding_params_note():
    # The PyTorch module's get_embedding(x) is just one branch of the same
    # shared net; triplet_net_forward(x, x, x, params)[0] reproduces it.
    pass


def init_params(key, in_dim, hidden_dim, embed_dim):
    k1, k2, k3, k4 = jax.random.split(key, 4)
    # Deterministic synthetic init (PyTorch-nn.Linear-like uniform scale).
    s1 = 1.0 / jnp.sqrt(in_dim)
    s2 = 1.0 / jnp.sqrt(hidden_dim)
    return {
        # Weights stored bf16 (MXU-native, half the DMA bytes); biases f32.
        "w1": jax.random.uniform(k1, (in_dim, hidden_dim), jnp.float32,
                                 -s1, s1).astype(jnp.bfloat16),
        "b1": jax.random.uniform(k2, (hidden_dim,), jnp.float32, -s1, s1),
        "w2": jax.random.uniform(k3, (hidden_dim, embed_dim), jnp.float32,
                                 -s2, s2).astype(jnp.bfloat16),
        "b2": jax.random.uniform(k4, (embed_dim,), jnp.float32, -s2, s2),
    }


if __name__ == "__main__":
    B, D, H, E = 8, 256, 256, 128  # batch, in_features, hidden, embedding dim

    key = jax.random.PRNGKey(0)
    kx1, kx2, kx3, kp = jax.random.split(key, 4)
    x1 = jax.random.normal(kx1, (B, D), jnp.float32)
    x2 = jax.random.normal(kx2, (B, D), jnp.float32)
    x3 = jax.random.normal(kx3, (B, D), jnp.float32)
    params = init_params(kp, D, H, E)

    fwd = jax.jit(triplet_net_forward)
    out1, out2, out3 = fwd(x1, x2, x3, params)
    jax.block_until_ready((out1, out2, out3))

    # Pure-JAX reference using the same bf16-operand / f32-accumulate recipe.
    def ref_embed(x):
        h = jnp.dot(x.astype(jnp.bfloat16), params["w1"],
                    preferred_element_type=jnp.float32) + params["b1"]
        h = jnp.maximum(h, 0.0)
        return jnp.dot(h.astype(jnp.bfloat16), params["w2"],
                       preferred_element_type=jnp.float32) + params["b2"]

    assert out1.shape == (B, E) and out2.shape == (B, E) and out3.shape == (B, E)
    assert jnp.allclose(out1, ref_embed(x1), atol=2e-3, rtol=2e-3)
    assert jnp.allclose(out2, ref_embed(x2), atol=2e-3, rtol=2e-3)
    assert jnp.allclose(out3, ref_embed(x3), atol=2e-3, rtol=2e-3)

    print("KERNEL_OK")
</pallas_src>

<mosaic_0001>
module attributes {stable_mosaic.version = 11 : i64} {
  func.func @kernel(%arg0: memref<8x256xf32, #tpu.memory_space<vmem>>, %arg1: memref<8x256xf32, #tpu.memory_space<vmem>>, %arg2: memref<8x256xf32, #tpu.memory_space<vmem>>, %arg3: memref<256x256xbf16, #tpu.memory_space<vmem>>, %arg4: memref<1x256xf32, #tpu.memory_space<vmem>>, %arg5: memref<256x128xbf16, #tpu.memory_space<vmem>>, %arg6: memref<1x128xf32, #tpu.memory_space<vmem>>, %arg7: memref<8x128xf32, #tpu.memory_space<vmem>>, %arg8: memref<8x128xf32, #tpu.memory_space<vmem>>, %arg9: memref<8x128xf32, #tpu.memory_space<vmem>>) attributes {dimension_semantics = [], scalar_prefetch = 0 : i64, scratch_operands = 0 : i64, tpu.core_type = #tpu.core_type<tc>} {
    %c0 = arith.constant 0 : index
    %c0_0 = arith.constant 0 : index
    %0 = vector.load %arg0[%c0, %c0_0] : memref<8x256xf32, #tpu.memory_space<vmem>>, vector<8x256xf32>
    %c0_1 = arith.constant 0 : index
    %c0_2 = arith.constant 0 : index
    %1 = vector.load %arg1[%c0_1, %c0_2] : memref<8x256xf32, #tpu.memory_space<vmem>>, vector<8x256xf32>
    %c0_3 = arith.constant 0 : index
    %c0_4 = arith.constant 0 : index
    %2 = vector.load %arg2[%c0_3, %c0_4] : memref<8x256xf32, #tpu.memory_space<vmem>>, vector<8x256xf32>
    %3 = tpu.concatenate %0, %1, %2 in 0 : vector<8x256xf32>, vector<8x256xf32>, vector<8x256xf32> -> vector<24x256xf32>
    %4 = arith.truncf %3 : vector<24x256xf32> to vector<24x256xbf16>
    %c0_5 = arith.constant 0 : index
    %c0_6 = arith.constant 0 : index
    %5 = vector.load %arg3[%c0_5, %c0_6] : memref<256x256xbf16, #tpu.memory_space<vmem>>, vector<256x256xbf16>
    %cst = arith.constant dense<0.000000e+00> : vector<24x256xf32>
    %6 = tpu.matmul %4, %5, %cst {dimension_numbers = #tpu.dot_dimension_numbers<[1], [0], [0], [1], [0, 0, 1, 1], [], []>} : vector<24x256xbf16>, vector<256x256xbf16>, vector<24x256xf32> -> vector<24x256xf32>
    %c0_7 = arith.constant 0 : index
    %c0_8 = arith.constant 0 : index
    %7 = vector.load %arg4[%c0_7, %c0_8] : memref<1x256xf32, #tpu.memory_space<vmem>>, vector<1x256xf32>
    %8 = vector.broadcast %7 : vector<1x256xf32> to vector<24x256xf32>
    %9 = arith.addf %6, %8 : vector<24x256xf32>
    %cst_9 = arith.constant 0.000000e+00 : f32
    %10 = vector.broadcast %cst_9 : f32 to vector<24x256xf32>
    %11 = arith.maximumf %9, %10 : vector<24x256xf32>
    %12 = arith.truncf %11 : vector<24x256xf32> to vector<24x256xbf16>
    %c0_10 = arith.constant 0 : index
    %c0_11 = arith.constant 0 : index
    %13 = vector.load %arg5[%c0_10, %c0_11] : memref<256x128xbf16, #tpu.memory_space<vmem>>, vector<256x128xbf16>
    %cst_12 = arith.constant dense<0.000000e+00> : vector<24x128xf32>
    %14 = tpu.matmul %12, %13, %cst_12 {dimension_numbers = #tpu.dot_dimension_numbers<[1], [0], [0], [1], [0, 0, 1, 1], [], []>} : vector<24x256xbf16>, vector<256x128xbf16>, vector<24x128xf32> -> vector<24x128xf32>
    %c0_13 = arith.constant 0 : index
    %c0_14 = arith.constant 0 : index
    %15 = vector.load %arg6[%c0_13, %c0_14] : memref<1x128xf32, #tpu.memory_space<vmem>>, vector<1x128xf32>
    %16 = vector.broadcast %15 : vector<1x128xf32> to vector<24x128xf32>
    %17 = arith.addf %14, %16 : vector<24x128xf32>
    %18 = vector.extract_strided_slice %17 {offsets = [0, 0], sizes = [8, 128], strides = [1, 1]} : vector<24x128xf32> to vector<8x128xf32>
    %c0_15 = arith.constant 0 : index
    %c0_16 = arith.constant 0 : index
    %19 = vector.load %arg7[%c0_15, %c0_16] : memref<8x128xf32, #tpu.memory_space<vmem>>, vector<8x128xf32>
    tpu.vector_store %arg7[%c0_15, %c0_16], %18 {strides = array<i32>} : memref<8x128xf32, #tpu.memory_space<vmem>>, vector<8x128xf32>,
    %20 = vector.extract_strided_slice %17 {offsets = [8, 0], sizes = [8, 128], strides = [1, 1]} : vector<24x128xf32> to vector<8x128xf32>
    %c0_17 = arith.constant 0 : index
    %c0_18 = arith.constant 0 : index
    %21 = vector.load %arg8[%c0_17, %c0_18] : memref<8x128xf32, #tpu.memory_space<vmem>>, vector<8x128xf32>
    tpu.vector_store %arg8[%c0_17, %c0_18], %20 {strides = array<i32>} : memref<8x128xf32, #tpu.memory_space<vmem>>, vector<8x128xf32>,
    %22 = vector.extract_strided_slice %17 {offsets = [16, 0], sizes = [8, 128], strides = [1, 1]} : vector<24x128xf32> to vector<8x128xf32>
    %c0_19 = arith.constant 0 : index
    %c0_20 = arith.constant 0 : index
    %23 = vector.load %arg9[%c0_19, %c0_20] : memref<8x128xf32, #tpu.memory_space<vmem>>, vector<8x128xf32>
    tpu.vector_store %arg9[%c0_19, %c0_20], %22 {strides = array<i32>} : memref<8x128xf32, #tpu.memory_space<vmem>>, vector<8x128xf32>,
    return
  }
}

</mosaic_0001>

<llo_original>
// kernel: triplet_net_forward.1
$region0: #{triplet_net_forward.1}
  #allocation0 [shape = 'u32[]', space=smem, size = 0x4, offset = 0x4, fixed_abs, tag = 'smem constant byte address 0x4 - core index']
  #allocation1 [shape = 'u32[144,128]{1,0:T(1,128)}', space=vmem, size = 0x12000, scoped, tag = 'internal scratch']
  %s0 = inlined_call_operand.hbm [shape: f32[8,256], index: 0, kind: input, shape index: {}]
  %s1 = inlined_call_operand.hbm [shape: f32[8,256], index: 1, kind: input, shape index: {}]
  %s2 = inlined_call_operand.hbm [shape: f32[8,256], index: 2, kind: input, shape index: {}]
  %s3 = inlined_call_operand.hbm [shape: bf16[256,256], index: 3, kind: input, shape index: {}]
  %s4 = inlined_call_operand.vmem [shape: f32[1,256], index: 4, kind: input, shape index: {}]
  %s5 = inlined_call_operand.hbm [shape: bf16[256,128], index: 5, kind: input, shape index: {}]
  %s6 = inlined_call_operand.vmem [shape: f32[1,128], index: 6, kind: input, shape index: {}]
  %s7 = inlined_call_operand.hbm [shape: f32[8,128], index: 7, kind: output, shape index: {0}]
  %s8 = inlined_call_operand.hbm [shape: f32[8,128], index: 8, kind: output, shape index: {1}]
  %s9 = inlined_call_operand.hbm [shape: f32[8,128], index: 9, kind: output, shape index: {2}]
  %10 = xla_tuple %s7, %s8, %s9
  %s11 = sld [smem:[#allocation0]]
  $region74: #{triplet_net_forward.1} parent=0
    _
  %s13 = ssub.s32 1, %s11
  %s14 = scalar_select 0, %s13, %s11
  $region1: #{triplet_net_forward.1} parent=0
    #allocation2 [shape = 'u8[8192]{0}', space=vmem, size = 0x2000, scoped, tag = 'input window, operand 0, single buffered']
    #allocation3 [shape = 's32[1]{0}', space=sflag, size = 0x4, scoped, tag = 'scoped memory for triplet_net_forward.1']
    #allocation4 [shape = 's32[1]{0}', space=sflag, size = 0x4, scoped, tag = 'scoped memory for triplet_net_forward.1']
    #allocation5 [shape = 'u8[8192]{0}', space=vmem, size = 0x2000, scoped, tag = 'input window, operand 1, single buffered']
    #allocation6 [shape = 's32[1]{0}', space=sflag, size = 0x4, scoped, tag = 'scoped memory for triplet_net_forward.1']
    #allocation7 [shape = 'u8[8192]{0}', space=vmem, size = 0x2000, scoped, tag = 'input window, operand 2, single buffered']
    #allocation8 [shape = 'u8[131072]{0}', space=vmem, size = 0x20000, scoped, tag = 'input window, operand 3, single buffered']
    #allocation9 [shape = 's32[1]{0}', space=sflag, size = 0x4, scoped, tag = 'scoped memory for triplet_net_forward.1']
    #allocation10 [shape = 'u8[65536]{0}', space=vmem, size = 0x10000, scoped, tag = 'input window, operand 5, single buffered']
    #allocation11 [shape = 'u8[4096]{0}', space=vmem, size = 0x1000, scoped, tag = 'output window, operand 0, single buffered']
    #allocation12 [shape = 'u8[4096]{0}', space=vmem, size = 0x1000, scoped, tag = 'output window, operand 1, single buffered']
    #allocation13 [shape = 's32[1]{0}', space=sflag, size = 0x4, scoped, tag = 'scoped memory for triplet_net_forward.1']
    #allocation14 [shape = 'u8[4096]{0}', space=vmem, size = 0x1000, scoped, tag = 'output window, operand 2, single buffered']
    %15 = vsyncpa [#allocation3], 0
    %16 = vsyncpa [#allocation6], 0
    %17 = vsyncpa [#allocation9], 0
    %18 = vsyncpa [#allocation4], 0
    %19 = vsyncpa [#allocation13], 0
    // Predicated region
    $region2: #{triplet_net_forward.1} parent=1 // pred_check
      _
    $region3: #{triplet_net_forward.1} parent=1 // pred_check_branch
      %21 = sbr.rel (0) target = $region5
    $region4: #{triplet_net_forward.1} parent=1 // pred_region
      %s23 = ssub.s32 256, 256
      %24 = vsyncadd [#allocation3], %s23
      %s26 = sshll.u32 [#allocation2], 4
      %s27 = int_to_ptr.vmem [resolvable:$true] %s26
      %29 = dma.hbm_to_vmem [thread:$0]  %s0, 256, %s27, [#allocation3]
    $region5: #{triplet_net_forward.1} parent=1 // pred_fallthru
      _
    // Predicated region
    $region6: #{triplet_net_forward.1} parent=1 // pred_check
      _
    $region7: #{triplet_net_forward.1} parent=1 // pred_check_branch
      %31 = sbr.rel (0) target = $region9
    $region8: #{triplet_net_forward.1} parent=1 // pred_region
      %s33 = ssub.s32 256, 256
      %34 = vsyncadd [#allocation6], %s33
      %s36 = sshll.u32 [#allocation5], 4
      %s37 = int_to_ptr.vmem [resolvable:$true] %s36
      %39 = dma.hbm_to_vmem [thread:$0]  %s1, 256, %s37, [#allocation6]
    $region9: #{triplet_net_forward.1} parent=1 // pred_fallthru
      _
    // Predicated region
    $region10: #{triplet_net_forward.1} parent=1 // pred_check
      _
    $region11: #{triplet_net_forward.1} parent=1 // pred_check_branch
      %41 = sbr.rel (0) target = $region13
    $region12: #{triplet_net_forward.1} parent=1 // pred_region
      %s43 = ssub.s32 256, 256
      %44 = vsyncadd [#allocation6], %s43
      %s46 = sshll.u32 [#allocation7], 4
      %s47 = int_to_ptr.vmem [resolvable:$true] %s46
      %49 = dma.hbm_to_vmem [thread:$0]  %s2, 256, %s47, [#allocation6]
    $region13: #{triplet_net_forward.1} parent=1 // pred_fallthru
      _
    // Predicated region
    $region14: #{triplet_net_forward.1} parent=1 // pred_check
      _
    $region15: #{triplet_net_forward.1} parent=1 // pred_check_branch
      %51 = sbr.rel (0) target = $region17
    $region16: #{triplet_net_forward.1} parent=1 // pred_region
      %s53 = ssub.s32 4096, 4096
      %54 = vsyncadd [#allocation9], %s53
      %s55 = sshll.u32 [#allocation8], 4
      %s56 = int_to_ptr.vmem [resolvable:$true] %s55
      %61 = dma.hbm_to_vmem [thread:$0]  %s3, 4096, %s56, [#allocation9], 128, 128, 8
    $region17: #{triplet_net_forward.1} parent=1 // pred_fallthru
      _
    // Predicated region
    $region18: #{triplet_net_forward.1} parent=1 // pred_check
      _
    $region19: #{triplet_net_forward.1} parent=1 // pred_check_branch
      %63 = sbr.rel (0) target = $region21
    $region20: #{triplet_net_forward.1} parent=1 // pred_region
      _
    $region21: #{triplet_net_forward.1} parent=1 // pred_fallthru
      _
    // Predicated region
    $region22: #{triplet_net_forward.1} parent=1 // pred_check
      _
    $region23: #{triplet_net_forward.1} parent=1 // pred_check_branch
      %65 = sbr.rel (0) target = $region25
    $region24: #{triplet_net_forward.1} parent=1 // pred_region
      %s67 = ssub.s32 2048, 2048
      %68 = vsyncadd [#allocation9], %s67
      %s69 = sshll.u32 [#allocation10], 4
      %s70 = int_to_ptr.vmem [resolvable:$true] %s69
      %75 = dma.hbm_to_vmem [thread:$0]  %s5, 2048, %s70, [#allocation9], 64, 64, 4
    $region25: #{triplet_net_forward.1} parent=1 // pred_fallthru
      _
    // Predicated region
    $region26: #{triplet_net_forward.1} parent=1 // pred_check
      _
    $region27: #{triplet_net_forward.1} parent=1 // pred_check_branch
      %77 = sbr.rel (0) target = $region29
    $region28: #{triplet_net_forward.1} parent=1 // pred_region
      _
    $region29: #{triplet_net_forward.1} parent=1 // pred_fallthru
      _
    // Predicated region
    $region30: #{triplet_net_forward.1} parent=1 // pred_check
      _
    $region31: #{triplet_net_forward.1} parent=1 // pred_check_branch
      %79 = sbr.rel (0) target = $region33
    $region32: #{triplet_net_forward.1} parent=1 // pred_region
      %80 = dma.done [#allocation3], 256
    $region33: #{triplet_net_forward.1} parent=1 // pred_fallthru
      _
    // Predicated region
    $region34: #{triplet_net_forward.1} parent=1 // pred_check
      _
    $region35: #{triplet_net_forward.1} parent=1 // pred_check_branch
      %82 = sbr.rel (0) target = $region37
    $region36: #{triplet_net_forward.1} parent=1 // pred_region
      %83 = dma.done [#allocation6], 256
    $region37: #{triplet_net_forward.1} parent=1 // pred_fallthru
      _
    // Predicated region
    $region38: #{triplet_net_forward.1} parent=1 // pred_check
      _
    $region39: #{triplet_net_forward.1} parent=1 // pred_check_branch
      %85 = sbr.rel (0) target = $region41
    $region40: #{triplet_net_forward.1} parent=1 // pred_region
      %86 = dma.done [#allocation6], 256
    $region41: #{triplet_net_forward.1} parent=1 // pred_fallthru
      _
    // Predicated region
    $region42: #{triplet_net_forward.1} parent=1 // pred_check
      _
    $region43: #{triplet_net_forward.1} parent=1 // pred_check_branch
      %88 = sbr.rel (0) target = $region45
    $region44: #{triplet_net_forward.1} parent=1 // pred_region
      %89 = dma.done [#allocation9], 4096
    $region45: #{triplet_net_forward.1} parent=1 // pred_fallthru
      _
    // Predicated region
    $region46: #{triplet_net_forward.1} parent=1 // pred_check
      _
    $region47: #{triplet_net_forward.1} parent=1 // pred_check_branch
      %91 = sbr.rel (0) target = $region49
    $region48: #{triplet_net_forward.1} parent=1 // pred_region
      %92 = dma.done [#allocation9], 2048
    $region49: #{triplet_net_forward.1} parent=1 // pred_fallthru
      _
    %v94 = vld [vmem:[#allocation2] sm:$0xff]
    %v95 = vld [vmem:[#allocation2 + $0x8] sm:$0xff]
    %v96 = vld [vmem:[#allocation5] sm:$0xff]
    %v97 = vld [vmem:[#allocation5 + $0x8] sm:$0xff]
    %v98 = vld [vmem:[#allocation7] sm:$0xff]
    %v99 = vld [vmem:[#allocation7 + $0x8] sm:$0xff]
    %v100 = vpack.c.bf16 %v96, %v94
    %v101 = vpack.c.bf16 %v97, %v95
    %v102 = vpack.c.bf16 %v98, %v98
    %v103 = vpack.c.bf16 %v99, %v99
    %v104 = vld [vmem:[#allocation8] sm:$0xff]
    %v105 = vld [vmem:[#allocation8 + $0x8] sm:$0xff]
    %v106 = vld [vmem:[#allocation8 + $0x10] sm:$0xff]
    %v107 = vld [vmem:[#allocation8 + $0x18] sm:$0xff]
    %v108 = vld [vmem:[#allocation8 + $0x20] sm:$0xff]
    %v109 = vld [vmem:[#allocation8 + $0x28] sm:$0xff]
    %v110 = vld [vmem:[#allocation8 + $0x30] sm:$0xff]
    %v111 = vld [vmem:[#allocation8 + $0x38] sm:$0xff]
    %v112 = vld [vmem:[#allocation8 + $0x40] sm:$0xff]
    %v113 = vld [vmem:[#allocation8 + $0x48] sm:$0xff]
    %v114 = vld [vmem:[#allocation8 + $0x50] sm:$0xff]
    %v115 = vld [vmem:[#allocation8 + $0x58] sm:$0xff]
    %v116 = vld [vmem:[#allocation8 + $0x60] sm:$0xff]
    %v117 = vld [vmem:[#allocation8 + $0x68] sm:$0xff]
    %v118 = vld [vmem:[#allocation8 + $0x70] sm:$0xff]
    %v119 = vld [vmem:[#allocation8 + $0x78] sm:$0xff]
    %v120 = vld [vmem:[#allocation8 + $0x80] sm:$0xff]
    %v121 = vld [vmem:[#allocation8 + $0x88] sm:$0xff]
    %v122 = vld [vmem:[#allocation8 + $0x90] sm:$0xff]
    %v123 = vld [vmem:[#allocation8 + $0x98] sm:$0xff]
    %v124 = vld [vmem:[#allocation8 + $0xa0] sm:$0xff]
    %v125 = vld [vmem:[#allocation8 + $0xa8] sm:$0xff]
    %v126 = vld [vmem:[#allocation8 + $0xb0] sm:$0xff]
    %v127 = vld [vmem:[#allocation8 + $0xb8] sm:$0xff]
    %v128 = vld [vmem:[#allocation8 + $0xc0] sm:$0xff]
    %v129 = vld [vmem:[#allocation8 + $0xc8] sm:$0xff]
    %v130 = vld [vmem:[#allocation8 + $0xd0] sm:$0xff]
    %v131 = vld [vmem:[#allocation8 + $0xd8] sm:$0xff]
    %v132 = vld [vmem:[#allocation8 + $0xe0] sm:$0xff]
    %v133 = vld [vmem:[#allocation8 + $0xe8] sm:$0xff]
    %v134 = vld [vmem:[#allocation8 + $0xf0] sm:$0xff]
    %v135 = vld [vmem:[#allocation8 + $0xf8] sm:$0xff]
    %v136 = vld [vmem:[%s4] sm:$0x3]
    %v138 = vlaneseq
    %v139 = vshrl.u32 %v138, 7
    %v140 = vsub.s32 0, %v139
    %v141 = vrot.slane %v136, %v140
    %v142 = vlaneseq
    %v143 = vshrl.u32 %v142, 7
    %v144 = vsub.s32 1, %v143
    %v145 = vrot.slane %v136, %v144
    %v180 = vunpack.c.l.b16 %v104
    %v181 = vunpack.c.h.b16 %v104
    %v182 = vunpack.c.l.b16 %v105
    %v183 = vunpack.c.h.b16 %v105
    %v184 = vunpack.c.l.b16 %v106
    %v185 = vunpack.c.h.b16 %v106
    %v186 = vunpack.c.l.b16 %v107
    %v187 = vunpack.c.h.b16 %v107
    %v188 = vunpack.c.l.b16 %v108
    %v189 = vunpack.c.h.b16 %v108
    %v190 = vunpack.c.l.b16 %v109
    %v191 = vunpack.c.h.b16 %v109
    %v192 = vunpack.c.l.b16 %v110
    %v193 = vunpack.c.h.b16 %v110
    %v194 = vunpack.c.l.b16 %v111
    %v195 = vunpack.c.h.b16 %v111
    %v196 = vunpack.c.l.b16 %v112
    %v197 = vunpack.c.h.b16 %v112
    %v198 = vunpack.c.l.b16 %v113
    %v199 = vunpack.c.h.b16 %v113
    %v200 = vunpack.c.l.b16 %v114
    %v201 = vunpack.c.h.b16 %v114
    %v202 = vunpack.c.l.b16 %v115
    %v203 = vunpack.c.h.b16 %v115
    %v204 = vunpack.c.l.b16 %v116
    %v205 = vunpack.c.h.b16 %v116
    %v206 = vunpack.c.l.b16 %v117
    %v207 = vunpack.c.h.b16 %v117
    %v208 = vunpack.c.l.b16 %v118
    %v209 = vunpack.c.h.b16 %v118
    %v210 = vunpack.c.l.b16 %v119
    %v211 = vunpack.c.h.b16 %v119
    %v212 = vunpack.c.l.b16 %v120
    %v213 = vunpack.c.h.b16 %v120
    %v214 = vunpack.c.l.b16 %v121
    %v215 = vunpack.c.h.b16 %v121
    %v216 = vunpack.c.l.b16 %v122
    %v217 = vunpack.c.h.b16 %v122
    %v218 = vunpack.c.l.b16 %v123
    %v219 = vunpack.c.h.b16 %v123
    %v220 = vunpack.c.l.b16 %v124
    %v221 = vunpack.c.h.b16 %v124
    %v222 = vunpack.c.l.b16 %v125
    %v223 = vunpack.c.h.b16 %v125
    %v224 = vunpack.c.l.b16 %v126
    %v225 = vunpack.c.h.b16 %v126
    %v226 = vunpack.c.l.b16 %v127
    %v227 = vunpack.c.h.b16 %v127
    %v228 = vunpack.c.l.b16 %v128
    %v229 = vunpack.c.h.b16 %v128
    %v230 = vunpack.c.l.b16 %v129
    %v231 = vunpack.c.h.b16 %v129
    %v232 = vunpack.c.l.b16 %v130
    %v233 = vunpack.c.h.b16 %v130
    %v234 = vunpack.c.l.b16 %v131
    %v235 = vunpack.c.h.b16 %v131
    %v236 = vunpack.c.l.b16 %v132
    %v237 = vunpack.c.h.b16 %v132
    %v238 = vunpack.c.l.b16 %v133
    %v239 = vunpack.c.h.b16 %v133
    %v240 = vunpack.c.l.b16 %v134
    %v241 = vunpack.c.h.b16 %v134
    %v242 = vunpack.c.l.b16 %v135
    %v243 = vunpack.c.h.b16 %v135
    %v244 = vpack.c.b16 %v182, %v180
    %v245 = vpack.c.b16 %v183, %v181
    %v246 = vpack.c.b16 %v186, %v184
    %v247 = vpack.c.b16 %v187, %v185
    %v248 = vpack.c.b16 %v190, %v188
    %v249 = vpack.c.b16 %v191, %v189
    %v250 = vpack.c.b16 %v194, %v192
    %v251 = vpack.c.b16 %v195, %v193
    %v252 = vpack.c.b16 %v198, %v196
    %v253 = vpack.c.b16 %v199, %v197
    %v254 = vpack.c.b16 %v202, %v200
    %v255 = vpack.c.b16 %v203, %v201
    %v256 = vpack.c.b16 %v206, %v204
    %v257 = vpack.c.b16 %v207, %v205
    %v258 = vpack.c.b16 %v210, %v208
    %v259 = vpack.c.b16 %v211, %v209
    %v260 = vpack.c.b16 %v214, %v212
    %v261 = vpack.c.b16 %v215, %v213
    %v262 = vpack.c.b16 %v218, %v216
    %v263 = vpack.c.b16 %v219, %v217
    %v264 = vpack.c.b16 %v222, %v220
    %v265 = vpack.c.b16 %v223, %v221
    %v266 = vpack.c.b16 %v226, %v224
    %v267 = vpack.c.b16 %v227, %v225
    %v268 = vpack.c.b16 %v230, %v228
    %v269 = vpack.c.b16 %v231, %v229
    %v270 = vpack.c.b16 %v234, %v232
    %v271 = vpack.c.b16 %v235, %v233
    %v272 = vpack.c.b16 %v238, %v236
    %v273 = vpack.c.b16 %v239, %v237
    %v274 = vpack.c.b16 %v242, %v240
    %v275 = vpack.c.b16 %v243, %v241
    %308 = vmatprep.subr.bf16.mxu0 %v259
    %309 = vmatpush1.bf16.msra.mxu0 %v258
    %310 = vmatprep.subr.bf16.mxu0 %v257
    %311 = vmatpush1.bf16.msra.mxu0 %v256
    %312 = vmatprep.subr.bf16.mxu0 %v255
    %313 = vmatpush1.bf16.msra.mxu0 %v254
    %314 = vmatprep.subr.bf16.mxu0 %v253
    %315 = vmatpush1.bf16.msra.mxu0 %v252
    %316 = vmatprep.subr.bf16.mxu0 %v251
    %317 = vmatpush1.bf16.msra.mxu0 %v250
    %318 = vmatprep.subr.bf16.mxu0 %v249
    %319 = vmatpush1.bf16.msra.mxu0 %v248
    %320 = vmatprep.subr.bf16.mxu0 %v247
    %321 = vmatpush1.bf16.msra.mxu0 %v246
    %322 = vmatprep.subr.bf16.mxu0 %v245
    %323 = vmatpush1.bf16.msra.mxu0 %v244
    %324 = vmatprep.subr.bf16.mxu0 %v275
    %325 = vmatpush2.bf16.msra.mxu0 %v274
    %326 = vmatprep.subr.bf16.mxu0 %v273
    %327 = vmatpush2.bf16.msra.mxu0 %v272
    %328 = vmatprep.subr.bf16.mxu0 %v271
    %329 = vmatpush2.bf16.msra.mxu0 %v270
    %330 = vmatprep.subr.bf16.mxu0 %v269
    %331 = vmatpush2.bf16.msra.mxu0 %v268
    %332 = vmatprep.subr.bf16.mxu0 %v267
    %333 = vmatpush2.bf16.msra.mxu0 %v266
    %334 = vmatprep.subr.bf16.mxu0 %v265
    %335 = vmatpush2.bf16.msra.mxu0 %v264
    %336 = vmatprep.subr.bf16.mxu0 %v263
    %337 = vmatpush2.bf16.msra.mxu0 %v262
    %338 = vmatprep.subr.bf16.mxu0 %v261
    %339 = vmatpush2.bf16.msra.mxu0 %v260
    %340 = vmatprep.mubr.bf16.mxu0 %v101
    %341 = vmatmul.mubr.bf16.gmra.mxu0 %v100
    %v342 = vpop.f32.mrf.mxu0
    %v343 = vadd.f32 %v141, %v342
    %v344 = vpop.f32.mrf.mxu0
    %v345 = vadd.f32 %v145, %v344
    %v346 = vpop.f32.mrf.mxu0
    %v347 = vadd.f32 %v141, %v346
    %v348 = vpop.f32.mrf.mxu0
    %v349 = vadd.f32 %v145, %v348
    %350 = vmatprep.mubr.bf16.mxu0 %v103
    %351 = vmatmul.mubr.bf16.gmra.mxu0 %v102
    %v352 = vpop.f32.mrf.mxu0
    %v353 = vadd.f32 %v141, %v352
    %v354 = vpop.f32.mrf.mxu0
    %v355 = vadd.f32 %v145, %v354
    %v356 = vpop.f32.mrf.mxu0
    %v357 = vpop.f32.mrf.mxu0
    %358 = vdwg.mxu0
    %v359 = vmax.f32 %v343, 0.0
    %v360 = vmax.f32 %v345, 0.0
    %v361 = vmax.f32 %v347, 0.0
    %v362 = vmax.f32 %v349, 0.0
    %v363 = vmax.f32 %v353, 0.0
    %v364 = vmax.f32 %v355, 0.0
    %v365 = vpack.c.bf16 %v361, %v359
    %v366 = vpack.c.bf16 %v362, %v360
    %v367 = vpack.c.bf16 %v363, %v363
    %v368 = vpack.c.bf16 %v364, %v364
    %v369 = vld [vmem:[#allocation10] sm:$0xf]
    %v370 = vld [vmem:[#allocation10 + $0x4] sm:$0xf]
    %v371 = vld [vmem:[#allocation10 + $0x8] sm:$0xf]
    %v372 = vld [vmem:[#allocation10 + $0xc] sm:$0xf]
    %v373 = vld [vmem:[#allocation10 + $0x10] sm:$0xf]
    %v374 = vld [vmem:[#allocation10 + $0x14] sm:$0xf]
    %v375 = vld [vmem:[#allocation10 + $0x18] sm:$0xf]
    %v376 = vld [vmem:[#allocation10 + $0x1c] sm:$0xf]
    %v377 = vld [vmem:[#allocation10 + $0x20] sm:$0xf]
    %v378 = vld [vmem:[#allocation10 + $0x24] sm:$0xf]
    %v379 = vld [vmem:[#allocation10 + $0x28] sm:$0xf]
    %v380 = vld [vmem:[#allocation10 + $0x2c] sm:$0xf]
    %v381 = vld [vmem:[#allocation10 + $0x30] sm:$0xf]
    %v382 = vld [vmem:[#allocation10 + $0x34] sm:$0xf]
    %v383 = vld [vmem:[#allocation10 + $0x38] sm:$0xf]
    %v384 = vld [vmem:[#allocation10 + $0x3c] sm:$0xf]
    %v385 = vld [vmem:[#allocation10 + $0x40] sm:$0xf]
    %v386 = vld [vmem:[#allocation10 + $0x44] sm:$0xf]
    %v387 = vld [vmem:[#allocation10 + $0x48] sm:$0xf]
    %v388 = vld [vmem:[#allocation10 + $0x4c] sm:$0xf]
    %v389 = vld [vmem:[#allocation10 + $0x50] sm:$0xf]
    %v390 = vld [vmem:[#allocation10 + $0x54] sm:$0xf]
    %v391 = vld [vmem:[#allocation10 + $0x58] sm:$0xf]
    %v392 = vld [vmem:[#allocation10 + $0x5c] sm:$0xf]
    %v393 = vld [vmem:[#allocation10 + $0x60] sm:$0xf]
    %v394 = vld [vmem:[#allocation10 + $0x64] sm:$0xf]
    %v395 = vld [vmem:[#allocation10 + $0x68] sm:$0xf]
    %v396 = vld [vmem:[#allocation10 + $0x6c] sm:$0xf]
    %v397 = vld [vmem:[#allocation10 + $0x70] sm:$0xf]
    %v398 = vld [vmem:[#allocation10 + $0x74] sm:$0xf]
    %v399 = vld [vmem:[#allocation10 + $0x78] sm:$0xf]
    %v400 = vld [vmem:[#allocation10 + $0x7c] sm:$0xf]
    %v401 = vld [vmem:[%s6] sm:$0x1]
    %v403 = vlaneseq
    %v404 = vshrl.u32 %v403, 7
    %v405 = vsub.s32 0, %v404
    %v406 = vrot.slane %v401, %v405
    %v440 = vunpack.c.l.b16 %v369
    %v441 = vunpack.c.l.b16 %v370
    %v442 = vunpack.c.l.b16 %v371
    %v443 = vunpack.c.l.b16 %v372
    %v444 = vunpack.c.l.b16 %v373
    %v445 = vunpack.c.l.b16 %v374
    %v446 = vunpack.c.l.b16 %v375
    %v447 = vunpack.c.l.b16 %v376
    %v448 = vunpack.c.l.b16 %v377
    %v449 = vunpack.c.l.b16 %v378
    %v450 = vunpack.c.l.b16 %v379
    %v451 = vunpack.c.l.b16 %v380
    %v452 = vunpack.c.l.b16 %v381
    %v453 = vunpack.c.l.b16 %v382
    %v454 = vunpack.c.l.b16 %v383
    %v455 = vunpack.c.l.b16 %v384
    %v456 = vunpack.c.l.b16 %v385
    %v457 = vunpack.c.l.b16 %v386
    %v458 = vunpack.c.l.b16 %v387
    %v459 = vunpack.c.l.b16 %v388
    %v460 = vunpack.c.l.b16 %v389
    %v461 = vunpack.c.l.b16 %v390
    %v462 = vunpack.c.l.b16 %v391
    %v463 = vunpack.c.l.b16 %v392
    %v464 = vunpack.c.l.b16 %v393
    %v465 = vunpack.c.l.b16 %v394
    %v466 = vunpack.c.l.b16 %v395
    %v467 = vunpack.c.l.b16 %v396
    %v468 = vunpack.c.l.b16 %v397
    %v469 = vunpack.c.l.b16 %v398
    %v470 = vunpack.c.l.b16 %v399
    %v471 = vunpack.c.l.b16 %v400
    %v472 = vpack.c.b16 %v441, %v440
    %v473 = vpack.c.b16 %v443, %v442
    %v474 = vpack.c.b16 %v445, %v444
    %v475 = vpack.c.b16 %v447, %v446
    %v476 = vpack.c.b16 %v449, %v448
    %v477 = vpack.c.b16 %v451, %v450
    %v478 = vpack.c.b16 %v453, %v452
    %v479 = vpack.c.b16 %v455, %v454
    %v480 = vpack.c.b16 %v457, %v456
    %v481 = vpack.c.b16 %v459, %v458
    %v482 = vpack.c.b16 %v461, %v460
    %v483 = vpack.c.b16 %v463, %v462
    %v484 = vpack.c.b16 %v465, %v464
    %v485 = vpack.c.b16 %v467, %v466
    %v486 = vpack.c.b16 %v469, %v468
    %v487 = vpack.c.b16 %v471, %v470
    %504 = vmatprep.subr.bf16.mxu0 0
    %505 = vmatpush1.bf16.msra.mxu0 %v479
    %506 = vmatprep.subr.bf16.mxu0 0
    %507 = vmatpush1.bf16.msra.mxu0 %v478
    %508 = vmatprep.subr.bf16.mxu0 0
    %509 = vmatpush1.bf16.msra.mxu0 %v477
    %510 = vmatprep.subr.bf16.mxu0 0
    %511 = vmatpush1.bf16.msra.mxu0 %v476
    %512 = vmatprep.subr.bf16.mxu0 0
    %513 = vmatpush1.bf16.msra.mxu0 %v475
    %514 = vmatprep.subr.bf16.mxu0 0
    %515 = vmatpush1.bf16.msra.mxu0 %v474
    %516 = vmatprep.subr.bf16.mxu0 0
    %517 = vmatpush1.bf16.msra.mxu0 %v473
    %518 = vmatprep.subr.bf16.mxu0 0
    %519 = vmatpush1.bf16.msra.mxu0 %v472
    %520 = vmatprep.subr.bf16.mxu0 0
    %521 = vmatpush2.bf16.msra.mxu0 %v487
    %522 = vmatprep.subr.bf16.mxu0 0
    %523 = vmatpush2.bf16.msra.mxu0 %v486
    %524 = vmatprep.subr.bf16.mxu0 0
    %525 = vmatpush2.bf16.msra.mxu0 %v485
    %526 = vmatprep.subr.bf16.mxu0 0
    %527 = vmatpush2.bf16.msra.mxu0 %v484
    %528 = vmatprep.subr.bf16.mxu0 0
    %529 = vmatpush2.bf16.msra.mxu0 %v483
    %530 = vmatprep.subr.bf16.mxu0 0
    %531 = vmatpush2.bf16.msra.mxu0 %v482
    %532 = vmatprep.subr.bf16.mxu0 0
    %533 = vmatpush2.bf16.msra.mxu0 %v481
    %534 = vmatprep.subr.bf16.mxu0 0
    %535 = vmatpush2.bf16.msra.mxu0 %v480
    %536 = vmatprep.mubr.bf16.mxu0 %v366
    %537 = vmatmul.mubr.bf16.gmra.mxu0 %v365
    %v538 = vpop.f32.mrf.mxu0
    %v539 = vadd.f32 %v406, %v538
    %v540 = vpop.f32.mrf.mxu0
    %v541 = vpop.f32.mrf.mxu0
    %v542 = vadd.f32 %v406, %v541
    %v543 = vpop.f32.mrf.mxu0
    %544 = vmatprep.mubr.bf16.mxu0 %v368
    %545 = vmatmul.mubr.bf16.gmra.mxu0 %v367
    %v546 = vpop.f32.mrf.mxu0
    %v547 = vadd.f32 %v406, %v546
    %v548 = vpop.f32.mrf.mxu0
    %v549 = vpop.f32.mrf.mxu0
    %v550 = vpop.f32.mrf.mxu0
    %551 = vdwg.mxu0
    %552 = vst [vmem:[#allocation11] sm:$0xff] %v539
    %553 = vst [vmem:[#allocation12] sm:$0xff] %v542
    %554 = vst [vmem:[#allocation14] sm:$0xff] %v547
    // Predicated region
    $region50: #{triplet_net_forward.1} parent=1 // pred_check
      _
    $region51: #{triplet_net_forward.1} parent=1 // pred_check_branch
      %556 = sbr.rel (0) target = $region53
    $region52: #{triplet_net_forward.1} parent=1 // pred_region
      %s558 = ssub.s32 128, 128
      %559 = vsyncadd [#allocation4], %s558
      %s561 = sshll.u32 [#allocation11], 4
      %s562 = int_to_ptr.vmem [resolvable:$true] %s561
      %564 = dma.vmem_to_hbm [thread:$0]  %s562, 128, %s7, [#allocation4]
    $region53: #{triplet_net_forward.1} parent=1 // pred_fallthru
      _
    // Predicated region
    $region54: #{triplet_net_forward.1} parent=1 // pred_check
      _
    $region55: #{triplet_net_forward.1} parent=1 // pred_check_branch
      %566 = sbr.rel (0) target = $region57
    $region56: #{triplet_net_forward.1} parent=1 // pred_region
      %s568 = ssub.s32 128, 128
      %569 = vsyncadd [#allocation13], %s568
      %s571 = sshll.u32 [#allocation12], 4
      %s572 = int_to_ptr.vmem [resolvable:$true] %s571
      %574 = dma.vmem_to_hbm [thread:$0]  %s572, 128, %s8, [#allocation13]
    $region57: #{triplet_net_forward.1} parent=1 // pred_fallthru
      _
    // Predicated region
    $region58: #{triplet_net_forward.1} parent=1 // pred_check
      _
    $region59: #{triplet_net_forward.1} parent=1 // pred_check_branch
      %576 = sbr.rel (0) target = $region61
    $region60: #{triplet_net_forward.1} parent=1 // pred_region
      %s578 = ssub.s32 128, 128
      %579 = vsyncadd [#allocation13], %s578
      %s581 = sshll.u32 [#allocation14], 4
      %s582 = int_to_ptr.vmem [resolvable:$true] %s581
      %584 = dma.vmem_to_hbm [thread:$0]  %s582, 128, %s9, [#allocation13]
    $region61: #{triplet_net_forward.1} parent=1 // pred_fallthru
      _
    // Predicated region
    $region62: #{triplet_net_forward.1} parent=1 // pred_check
      _
    $region63: #{triplet_net_forward.1} parent=1 // pred_check_branch
      %586 = sbr.rel (0) target = $region65
    $region64: #{triplet_net_forward.1} parent=1 // pred_region
      %587 = dma.done [#allocation4], 128
    $region65: #{triplet_net_forward.1} parent=1 // pred_fallthru
      _
    // Predicated region
    $region66: #{triplet_net_forward.1} parent=1 // pred_check
      _
    $region67: #{triplet_net_forward.1} parent=1 // pred_check_branch
      %589 = sbr.rel (0) target = $region69
    $region68: #{triplet_net_forward.1} parent=1 // pred_region
      %590 = dma.done [#allocation13], 128
    $region69: #{triplet_net_forward.1} parent=1 // pred_fallthru
      _
    // Predicated region
    $region70: #{triplet_net_forward.1} parent=1 // pred_check
      _
    $region71: #{triplet_net_forward.1} parent=1 // pred_check_branch
      %592 = sbr.rel (0) target = $region73
    $region72: #{triplet_net_forward.1} parent=1 // pred_region
      %593 = dma.done [#allocation13], 128
    $region73: #{triplet_net_forward.1} parent=1 // pred_fallthru
      _
    %594 = vsyncpa [#allocation3], 1
    %595 = vsyncpa [#allocation6], 1
    %596 = vsyncpa [#allocation9], 1
    %597 = vsyncpa [#allocation4], 1
    %598 = vsyncpa [#allocation13], 1

</llo_original>
